<compile_context>
chip_gen: v5e
topology: v5e:2x2
jax: 0.10.0
libtpu: 0.0.40
codegen_flags: <defaults>
</compile_context>

<pallas_src>
import jax
import jax.numpy as jnp
from jax.experimental import pallas as pl
from jax.experimental.pallas import tpu as pltpu

_LANE = 128           # lane-axis padding (A's src dim, Fin, Fout)
_DST_ALIGN = 32       # sublane packing of int8 A rows (covers bf16=16, f32=8)
_PREF_DST_TILE = 256  # preferred dst rows per grid step
_PREF_SRC_TILE = 512  # preferred src (contraction) width per grid step


def _round_up(n, m):
    return ((n + m - 1) // m) * m


def _pad2d(x, rows, cols):
    return jnp.pad(x, ((0, rows - x.shape[0]), (0, cols - x.shape[1])))


def _pick_tile(padded, preferred, align):
    """Largest multiple of `align` that divides `padded` and is <= preferred."""
    t = min(padded, max(preferred, align))
    t -= t % align
    while t > align and padded % t:
        t -= align
    return t


def _vmem_limit(working_set_bytes):
    # 2x headroom over the computed working set, floored at 16 MiB, capped well
    # under v7x's 64 MiB physical VMEM.
    return int(min(max(2 * working_set_bytes, 16 << 20), 100 << 20))


# --------------------------------------------------------------------------- #
# Kernels
# --------------------------------------------------------------------------- #
def _agg_first_kernel(a_ref, x_ref, ns_ref, nd_ref, w_ref, b_ref, o_ref, acc_ref):
    """out = ((A @ (x*ns)) * nd) @ W + b, contraction streamed over src tiles."""
    s = pl.program_id(1)

    @pl.when(s == 0)
    def _():
        acc_ref[...] = jnp.zeros_like(acc_ref)

    # int8 -> f32 -> bf16 widen right after the tile DMA lands (VPU work that
    # co-issues under the MXU); A values are exactly 0/1 so bf16 is exact.
    a_bf = a_ref[...].astype(jnp.float32).astype(jnp.bfloat16)
    xs = (x_ref[...] * ns_ref[...]).astype(jnp.bfloat16)
    acc_ref[...] += jnp.dot(a_bf, xs, preferred_element_type=jnp.float32)

    @pl.when(s == pl.num_programs(1) - 1)
    def _():
        agg = (acc_ref[...] * nd_ref[...]).astype(jnp.bfloat16)
        o_ref[...] = (jnp.dot(agg, w_ref[...], preferred_element_type=jnp.float32)
                      + b_ref[...])


def _transform_kernel(x_ref, w_ref, ns_ref, t_ref):
    """t = ((x @ W) * ns).bf16 — per-src-node transform for the Fin>Fout path."""
    t = jnp.dot(x_ref[...].astype(jnp.bfloat16), w_ref[...],
                preferred_element_type=jnp.float32)
    t_ref[...] = (t * ns_ref[...]).astype(jnp.bfloat16)


def _agg_pre_kernel(a_ref, t_ref, nd_ref, b_ref, o_ref, acc_ref):
    """out = (A @ t) * nd + b, contraction streamed over src tiles."""
    s = pl.program_id(1)

    @pl.when(s == 0)
    def _():
        acc_ref[...] = jnp.zeros_like(acc_ref)

    a_bf = a_ref[...].astype(jnp.float32).astype(jnp.bfloat16)
    acc_ref[...] += jnp.dot(a_bf, t_ref[...], preferred_element_type=jnp.float32)

    @pl.when(s == pl.num_programs(1) - 1)
    def _():
        o_ref[...] = acc_ref[...] * nd_ref[...] + b_ref[...]


# --------------------------------------------------------------------------- #
# pallas_call wrappers (one layer each)
# --------------------------------------------------------------------------- #
def _agg_first_call(a_i8, x, ns, nd, w_bf, b):
    nd_pad, ns_pad = a_i8.shape
    fin_pad, fout_pad = w_bf.shape
    tile_nd = _pick_tile(nd_pad, _PREF_DST_TILE, _DST_ALIGN)
    tile_ns = _pick_tile(ns_pad, _PREF_SRC_TILE, _LANE)
    grid = (nd_pad // tile_nd, ns_pad // tile_ns)

    working_set = (2 * tile_nd * tile_ns * 1        # A tile, int8, double-buffered
                   + 2 * tile_ns * fin_pad * 4      # x tile, f32
                   + 2 * (tile_ns + tile_nd) * 4    # ns / nd tiles
                   + 2 * fin_pad * fout_pad * 2     # W, bf16 (index-invariant)
                   + 2 * fout_pad * 4               # bias
                   + 2 * tile_nd * fout_pad * 4     # out tile, f32
                   + tile_nd * fin_pad * 4)         # accumulator scratch
    cost = pl.CostEstimate(
        flops=2 * nd_pad * ns_pad * fin_pad + 2 * nd_pad * fin_pad * fout_pad,
        transcendentals=0,
        bytes_accessed=(nd_pad * ns_pad + ns_pad * fin_pad * 4
                        + fin_pad * fout_pad * 2 + nd_pad * fout_pad * 4
                        + (ns_pad + nd_pad + fout_pad) * 4))

    return pl.pallas_call(
        _agg_first_kernel,
        out_shape=jax.ShapeDtypeStruct((nd_pad, fout_pad), jnp.float32),
        grid_spec=pltpu.PrefetchScalarGridSpec(
            num_scalar_prefetch=0,
            grid=grid,
            in_specs=[
                pl.BlockSpec((tile_nd, tile_ns), lambda i, s: (i, s)),   # A
                pl.BlockSpec((tile_ns, fin_pad), lambda i, s: (s, 0)),   # x
                pl.BlockSpec((tile_ns, 1), lambda i, s: (s, 0)),         # ns
                pl.BlockSpec((tile_nd, 1), lambda i, s: (i, 0)),         # nd
                pl.BlockSpec((fin_pad, fout_pad), lambda i, s: (0, 0)),  # W
                pl.BlockSpec((1, fout_pad), lambda i, s: (0, 0)),        # b
            ],
            out_specs=pl.BlockSpec((tile_nd, fout_pad), lambda i, s: (i, 0)),
            scratch_shapes=[pltpu.VMEM((tile_nd, fin_pad), jnp.float32)],
        ),
        compiler_params=pltpu.CompilerParams(
            dimension_semantics=("parallel", "arbitrary"),
            vmem_limit_bytes=_vmem_limit(working_set)),
        cost_estimate=cost,
    )(a_i8, x, ns, nd, w_bf, b)


def _transform_call(x, w_bf, ns):
    ns_pad, fin_pad = x.shape
    fout_pad = w_bf.shape[1]
    tile_ns = _pick_tile(ns_pad, _PREF_SRC_TILE, _LANE)
    grid = (ns_pad // tile_ns,)
    # TODO(synk): tile the Fin contraction (extra 'arbitrary' grid axis + f32
    # accumulator) once Fin_pad is large enough that x tile + W stress VMEM.
    working_set = (2 * tile_ns * fin_pad * 4 + 2 * fin_pad * fout_pad * 2
                   + 2 * tile_ns * 4 + 2 * tile_ns * fout_pad * 2)
    cost = pl.CostEstimate(
        flops=2 * ns_pad * fin_pad * fout_pad, transcendentals=0,
        bytes_accessed=(ns_pad * fin_pad * 4 + fin_pad * fout_pad * 2
                        + ns_pad * 4 + ns_pad * fout_pad * 2))
    return pl.pallas_call(
        _transform_kernel,
        out_shape=jax.ShapeDtypeStruct((ns_pad, fout_pad), jnp.bfloat16),
        grid_spec=pltpu.PrefetchScalarGridSpec(
            num_scalar_prefetch=0,
            grid=grid,
            in_specs=[
                pl.BlockSpec((tile_ns, fin_pad), lambda s: (s, 0)),
                pl.BlockSpec((fin_pad, fout_pad), lambda s: (0, 0)),
                pl.BlockSpec((tile_ns, 1), lambda s: (s, 0)),
            ],
            out_specs=pl.BlockSpec((tile_ns, fout_pad), lambda s: (s, 0)),
        ),
        compiler_params=pltpu.CompilerParams(
            dimension_semantics=("parallel",),
            vmem_limit_bytes=_vmem_limit(working_set)),
        cost_estimate=cost,
    )(x, w_bf, ns)


def _agg_pre_call(a_i8, t, nd, b):
    nd_pad, ns_pad = a_i8.shape
    fout_pad = t.shape[1]
    tile_nd = _pick_tile(nd_pad, _PREF_DST_TILE, _DST_ALIGN)
    tile_ns = _pick_tile(ns_pad, _PREF_SRC_TILE, _LANE)
    grid = (nd_pad // tile_nd, ns_pad // tile_ns)

    working_set = (2 * tile_nd * tile_ns + 2 * tile_ns * fout_pad * 2
                   + 2 * tile_nd * 4 + 2 * fout_pad * 4
                   + 2 * tile_nd * fout_pad * 4 + tile_nd * fout_pad * 4)
    cost = pl.CostEstimate(
        flops=2 * nd_pad * ns_pad * fout_pad, transcendentals=0,
        bytes_accessed=(nd_pad * ns_pad + ns_pad * fout_pad * 2
                        + (nd_pad + fout_pad) * 4 + nd_pad * fout_pad * 4))

    return pl.pallas_call(
        _agg_pre_kernel,
        out_shape=jax.ShapeDtypeStruct((nd_pad, fout_pad), jnp.float32),
        grid_spec=pltpu.PrefetchScalarGridSpec(
            num_scalar_prefetch=0,
            grid=grid,
            in_specs=[
                pl.BlockSpec((tile_nd, tile_ns), lambda i, s: (i, s)),   # A
                pl.BlockSpec((tile_ns, fout_pad), lambda i, s: (s, 0)),  # t
                pl.BlockSpec((tile_nd, 1), lambda i, s: (i, 0)),         # nd
                pl.BlockSpec((1, fout_pad), lambda i, s: (0, 0)),        # b
            ],
            out_specs=pl.BlockSpec((tile_nd, fout_pad), lambda i, s: (i, 0)),
            scratch_shapes=[pltpu.VMEM((tile_nd, fout_pad), jnp.float32)],
        ),
        compiler_params=pltpu.CompilerParams(
            dimension_semantics=("parallel", "arbitrary"),
            vmem_limit_bytes=_vmem_limit(working_set)),
        cost_estimate=cost,
    )(a_i8, t, nd, b)


# --------------------------------------------------------------------------- #
# Graph-static preprocessing (call once per block set, reuse across forwards)
# --------------------------------------------------------------------------- #
def prepare_blocks(adjs):
    """Pads adjacencies to int8 and precomputes clamped-degree rsqrt norms."""
    n_nodes = [adjs[0].shape[1]] + [a.shape[0] for a in adjs]
    # Every node dim except the final dst frontier lands on a lane axis (it is
    # the last dim of some layer's A) -> pad to 128; the final dst dim is
    # sublane-only -> pad only to the int8 sublane packing (32).
    n_pad = ([_round_up(n, _LANE) for n in n_nodes[:-1]]
             + [_round_up(n_nodes[-1], _DST_ALIGN)])
    blocks = []
    for i, a in enumerate(adjs):
        a = a.astype(jnp.float32)
        # DGL clamps degrees to min 1 -> isolated nodes get norm = 1.
        ns = jax.lax.rsqrt(jnp.maximum(jnp.sum(a, axis=0), 1.0))[:, None]
        nd = jax.lax.rsqrt(jnp.maximum(jnp.sum(a, axis=1), 1.0))[:, None]
        blocks.append((
            _pad2d(a, n_pad[i + 1], n_pad[i]).astype(jnp.int8),  # 0/1 exact
            # ns is ZERO-padded on purpose: padded dst rows of the previous
            # layer equal its bias (nd pads to 0, then +b); the zero ns of the
            # NEXT layer is what keeps that leak out of real rows.  Keep this
            # padding if anything about the layer math changes.
            _pad2d(ns, n_pad[i], 1),
            _pad2d(nd, n_pad[i + 1], 1),
        ))
    return {"blocks": blocks, "n_pad": n_pad, "n_dst": n_nodes[-1]}


class GCNPallas:
    """Mirror of the PyTorch GCN module (GraphConv stack, no activations)."""

    def __init__(self, input_dim, hidden_dim, output_dim, gnn_layer, key):
        self.gnn_layer = gnn_layer
        self.dims = [input_dim] + [hidden_dim] * (gnn_layer - 1) + [output_dim]
        self.f_pad = [_round_up(f, _LANE) for f in self.dims]
        self.params = []         # f32 originals (reference math)
        self.packed_params = []  # padded once, W pre-cast to bf16, bias f32
        for i in range(gnn_layer):
            key, kw = jax.random.split(key)
            fin, fout = self.dims[i], self.dims[i + 1]
            # deterministic synthetic init (GraphConv uses xavier; any det. init ok)
            w = (jax.random.normal(kw, (fin, fout), jnp.float32)
                 * (1.0 / jnp.sqrt(jnp.float32(fin))))
            bias = jnp.zeros((1, fout), jnp.float32)
            self.params.append((w, bias))
            self.packed_params.append((
                _pad2d(w, self.f_pad[i], self.f_pad[i + 1]).astype(jnp.bfloat16),
                _pad2d(bias, 1, self.f_pad[i + 1]),
            ))

    def forward(self, prepared, src_feat):
        """prepared: output of prepare_blocks(adjs); src_feat: (n_src_0, input_dim)."""
        n_pad = prepared["n_pad"]
        x = _pad2d(src_feat.astype(jnp.float32), n_pad[0], self.f_pad[0])
        for i, (a_i8, ns, nd) in enumerate(prepared["blocks"]):
            w_bf, b = self.packed_params[i]
            fin, fout = self.dims[i], self.dims[i + 1]
            if fin > fout:
                # DGL's rule: transform first when it shrinks the feature width.
                t = _transform_call(x, w_bf, ns)
                x = _agg_pre_call(a_i8, t, nd, b)
            else:
                x = _agg_first_call(a_i8, x, ns, nd, w_bf, b)
        return x[:prepared["n_dst"], :self.dims[-1]]


if __name__ == "__main__":
    input_dim, hidden_dim, output_dim, gnn_layer = 16, 32, 8, 3
    # node counts per "block" frontier: src of block i = n_nodes[i], dst = n_nodes[i+1]
    n_nodes = [40, 24, 16, 8]

    key = jax.random.PRNGKey(0)
    key, kfeat = jax.random.split(key)
    src_feat = jax.random.normal(kfeat, (n_nodes[0], input_dim), jnp.float32)

    adjs = []
    for i in range(gnn_layer):
        key, ka = jax.random.split(key)
        a = (jax.random.uniform(ka, (n_nodes[i + 1], n_nodes[i])) < 0.3
             ).astype(jnp.float32)
        adjs.append(a)

    key, kmodel = jax.random.split(key)
    model = GCNPallas(input_dim, hidden_dim, output_dim, gnn_layer, kmodel)

    prepared = prepare_blocks(adjs)          # graph-static: do once, reuse
    out = jax.block_until_ready(model.forward(prepared, src_feat))
    assert out.shape == (n_nodes[-1], output_dim), out.shape

    # Reference 1: DGL GraphConv semantics in pure f32 (loose tol: kernel uses
    # bf16 MXU operands with f32 accumulation).
    def ref_f32(adjs, feat, params):
        for i, a in enumerate(adjs):
            w, b = params[i]
            ns = jax.lax.rsqrt(jnp.maximum(jnp.sum(a, axis=0), 1.0))[:, None]
            nd = jax.lax.rsqrt(jnp.maximum(jnp.sum(a, axis=1), 1.0))[:, None]
            feat = ((a @ (feat * ns)) * nd) @ w + b
        return feat

    ref1 = ref_f32(adjs, src_feat, model.params)
    assert jnp.allclose(out, ref1, atol=5e-2, rtol=5e-2)

    # Reference 2: identical math with the kernel's bf16 cast points (tight tol).
    def ref_bf16(adjs, feat, params, dims):
        bf = jnp.bfloat16
        for i, a in enumerate(adjs):
            w, b = params[i]
            fin, fout = dims[i], dims[i + 1]
            ns = jax.lax.rsqrt(jnp.maximum(jnp.sum(a, axis=0), 1.0))[:, None]
            nd = jax.lax.rsqrt(jnp.maximum(jnp.sum(a, axis=1), 1.0))[:, None]
            a_bf = a.astype(bf)
            w_bf = w.astype(bf)
            if fin > fout:
                t = jnp.dot(feat.astype(bf), w_bf, preferred_element_type=jnp.float32)
                t = (t * ns).astype(bf)
                feat = jnp.dot(a_bf, t, preferred_element_type=jnp.float32) * nd + b
            else:
                t = (feat * ns).astype(bf)
                agg = jnp.dot(a_bf, t, preferred_element_type=jnp.float32)
                agg = (agg * nd).astype(bf)
                feat = jnp.dot(agg, w_bf, preferred_element_type=jnp.float32) + b
        return feat

    ref2 = ref_bf16(adjs, src_feat, model.params, model.dims)
    assert jnp.allclose(out, ref2, atol=2e-3, rtol=2e-3)

    print("KERNEL_OK")
</pallas_src>

<mosaic_0001>
module attributes {stable_mosaic.version = 11 : i64} {
  func.func @_agg_first_kernel(%arg0: i32, %arg1: i32, %arg2: memref<128x128xi8, #tpu.memory_space<vmem>>, %arg3: memref<128x128xf32, #tpu.memory_space<vmem>>, %arg4: memref<128x1xf32, #tpu.memory_space<vmem>>, %arg5: memref<128x1xf32, #tpu.memory_space<vmem>>, %arg6: memref<128x128xbf16, #tpu.memory_space<vmem>>, %arg7: memref<1x128xf32, #tpu.memory_space<vmem>>, %arg8: memref<128x128xf32, #tpu.memory_space<vmem>>, %arg9: memref<128x128xf32, #tpu.memory_space<vmem>>) attributes {dimension_semantics = [#tpu.dimension_semantics<parallel>, #tpu.dimension_semantics<arbitrary>], iteration_bounds = array<i64: 1, 1>, scalar_prefetch = 0 : i64, scratch_operands = 1 : i64, tpu.core_type = #tpu.core_type<tc>, window_params = [{transform_indices = @transform_0, window_bounds = array<i64: 128, 128>}, {transform_indices = @transform_1, window_bounds = array<i64: 128, 128>}, {transform_indices = @transform_2, window_bounds = array<i64: 128, 1>}, {transform_indices = @transform_3, window_bounds = array<i64: 128, 1>}, {pipeline_mode = #tpu.pipeline_mode<synchronous>, transform_indices = @transform_4, window_bounds = array<i64: 128, 128>}, {pipeline_mode = #tpu.pipeline_mode<synchronous>, transform_indices = @transform_5, window_bounds = array<i64: 1, 128>}, {transform_indices = @transform_6, window_bounds = array<i64: 128, 128>}]} {
    %c0_i32 = arith.constant 0 : i32
    %0 = arith.cmpi eq, %arg1, %c0_i32 : i32
    %1 = arith.extui %0 : i1 to i32
    %c0_i32_0 = arith.constant 0 : i32
    %2 = arith.cmpi ne, %1, %c0_i32_0 : i32
    scf.if %2 {
      %cst_12 = arith.constant 0.000000e+00 : f32
      %18 = vector.broadcast %cst_12 : f32 to vector<128x128xf32>
      %c0_13 = arith.constant 0 : index
      %c0_14 = arith.constant 0 : index
      %19 = vector.load %arg9[%c0_13, %c0_14] : memref<128x128xf32, #tpu.memory_space<vmem>>, vector<128x128xf32>
      tpu.vector_store %arg9[%c0_13, %c0_14], %18 {strides = array<i32>} : memref<128x128xf32, #tpu.memory_space<vmem>>, vector<128x128xf32>,
    } else {
    }
    %c0 = arith.constant 0 : index
    %c0_1 = arith.constant 0 : index
    %3 = vector.load %arg2[%c0, %c0_1] : memref<128x128xi8, #tpu.memory_space<vmem>>, vector<128x128xi8>
    %4 = arith.sitofp %3 : vector<128x128xi8> to vector<128x128xf32>
    %5 = arith.truncf %4 : vector<128x128xf32> to vector<128x128xbf16>
    %c0_2 = arith.constant 0 : index
    %c0_3 = arith.constant 0 : index
    %6 = vector.load %arg3[%c0_2, %c0_3] : memref<128x128xf32, #tpu.memory_space<vmem>>, vector<128x128xf32>
    %c0_4 = arith.constant 0 : index
    %c0_5 = arith.constant 0 : index
    %7 = vector.load %arg4[%c0_4, %c0_5] : memref<128x1xf32, #tpu.memory_space<vmem>>, vector<128x1xf32>
    %8 = vector.broadcast %7 : vector<128x1xf32> to vector<128x128xf32>
    %9 = arith.mulf %6, %8 : vector<128x128xf32>
    %10 = arith.truncf %9 : vector<128x128xf32> to vector<128x128xbf16>
    %c0_6 = arith.constant 0 : index
    %c0_7 = arith.constant 0 : index
    %11 = vector.load %arg9[%c0_6, %c0_7] : memref<128x128xf32, #tpu.memory_space<vmem>>, vector<128x128xf32>
    %cst = arith.constant dense<0.000000e+00> : vector<128x128xf32>
    %12 = tpu.matmul %5, %10, %cst {dimension_numbers = #tpu.dot_dimension_numbers<[1], [0], [0], [1], [0, 0, 1, 1], [], []>} : vector<128x128xbf16>, vector<128x128xbf16>, vector<128x128xf32> -> vector<128x128xf32>
    %13 = arith.addf %11, %12 : vector<128x128xf32>
    %c0_8 = arith.constant 0 : index
    %c0_9 = arith.constant 0 : index
    %14 = vector.load %arg9[%c0_8, %c0_9] : memref<128x128xf32, #tpu.memory_space<vmem>>, vector<128x128xf32>
    tpu.vector_store %arg9[%c0_8, %c0_9], %13 {strides = array<i32>} : memref<128x128xf32, #tpu.memory_space<vmem>>, vector<128x128xf32>,
    %c0_i32_10 = arith.constant 0 : i32
    %15 = arith.cmpi eq, %arg1, %c0_i32_10 : i32
    %16 = arith.extui %15 : i1 to i32
    %c0_i32_11 = arith.constant 0 : i32
    %17 = arith.cmpi ne, %16, %c0_i32_11 : i32
    scf.if %17 {
      %c0_12 = arith.constant 0 : index
      %c0_13 = arith.constant 0 : index
      %18 = vector.load %arg9[%c0_12, %c0_13] : memref<128x128xf32, #tpu.memory_space<vmem>>, vector<128x128xf32>
      %c0_14 = arith.constant 0 : index
      %c0_15 = arith.constant 0 : index
      %19 = vector.load %arg5[%c0_14, %c0_15] : memref<128x1xf32, #tpu.memory_space<vmem>>, vector<128x1xf32>
      %20 = vector.broadcast %19 : vector<128x1xf32> to vector<128x128xf32>
      %21 = arith.mulf %18, %20 : vector<128x128xf32>
      %22 = arith.truncf %21 : vector<128x128xf32> to vector<128x128xbf16>
      %c0_16 = arith.constant 0 : index
      %c0_17 = arith.constant 0 : index
      %23 = vector.load %arg6[%c0_16, %c0_17] : memref<128x128xbf16, #tpu.memory_space<vmem>>, vector<128x128xbf16>
      %cst_18 = arith.constant dense<0.000000e+00> : vector<128x128xf32>
      %24 = tpu.matmul %22, %23, %cst_18 {dimension_numbers = #tpu.dot_dimension_numbers<[1], [0], [0], [1], [0, 0, 1, 1], [], []>} : vector<128x128xbf16>, vector<128x128xbf16>, vector<128x128xf32> -> vector<128x128xf32>
      %c0_19 = arith.constant 0 : index
      %c0_20 = arith.constant 0 : index
      %25 = vector.load %arg7[%c0_19, %c0_20] : memref<1x128xf32, #tpu.memory_space<vmem>>, vector<1x128xf32>
      %26 = vector.broadcast %25 : vector<1x128xf32> to vector<128x128xf32>
      %27 = arith.addf %24, %26 : vector<128x128xf32>
      %c0_21 = arith.constant 0 : index
      %c0_22 = arith.constant 0 : index
      %28 = vector.load %arg8[%c0_21, %c0_22] : memref<128x128xf32, #tpu.memory_space<vmem>>, vector<128x128xf32>
      tpu.vector_store %arg8[%c0_21, %c0_22], %27 {strides = array<i32>} : memref<128x128xf32, #tpu.memory_space<vmem>>, vector<128x128xf32>,
    } else {
    }
    return
  }
  func.func @transform_0(%arg0: i32, %arg1: i32) -> (i32, i32) {
    %c0_i32 = arith.constant 0 : i32
    return %arg0, %arg1 : i32, i32
  }
  func.func @transform_1(%arg0: i32, %arg1: i32) -> (i32, i32) {
    %c0_i32 = arith.constant 0 : i32
    %c0_i32_0 = arith.constant 0 : i32
    return %arg1, %c0_i32 : i32, i32
  }
  func.func @transform_2(%arg0: i32, %arg1: i32) -> (i32, i32) {
    %c0_i32 = arith.constant 0 : i32
    %c0_i32_0 = arith.constant 0 : i32
    return %arg1, %c0_i32 : i32, i32
  }
  func.func @transform_3(%arg0: i32, %arg1: i32) -> (i32, i32) {
    %c0_i32 = arith.constant 0 : i32
    %c0_i32_0 = arith.constant 0 : i32
    return %arg0, %c0_i32 : i32, i32
  }
  func.func @transform_4(%arg0: i32, %arg1: i32) -> (i32, i32) {
    %c0_i32 = arith.constant 0 : i32
    %c0_i32_0 = arith.constant 0 : i32
    %c0_i32_1 = arith.constant 0 : i32
    return %c0_i32, %c0_i32_0 : i32, i32
  }
  func.func @transform_5(%arg0: i32, %arg1: i32) -> (i32, i32) {
    %c0_i32 = arith.constant 0 : i32
    %c0_i32_0 = arith.constant 0 : i32
    %c0_i32_1 = arith.constant 0 : i32
    return %c0_i32, %c0_i32_0 : i32, i32
  }
  func.func @transform_6(%arg0: i32, %arg1: i32) -> (i32, i32) {
    %c0_i32 = arith.constant 0 : i32
    %c0_i32_0 = arith.constant 0 : i32
    return %arg0, %c0_i32 : i32, i32
  }
}

</mosaic_0001>

<llo_original>
// kernel: tpu_custom_call.1
$region0: #{tpu_custom_call.1}
  #allocation0 [shape = 'u32[]', space=smem, size = 0x4, offset = 0x4, fixed_abs, tag = 'smem constant byte address 0x4 - core index']
  #allocation1 [shape = 'u32[72,128]{1,0:T(1,128)}', space=vmem, size = 0x9000, scoped, tag = 'internal scratch']
  #allocation2 [shape = 'f32[128,128]{1,0:T(8,128)}', space=vmem, size = 0x10000, scoped, tag = 'scratch operand']
  %s0 = inlined_call_operand.vmem [shape: s8[128,128], index: 0, kind: input, shape index: {}]
  %s1 = inlined_call_operand.vmem [shape: f32[128,128], index: 1, kind: input, shape index: {}]
  %s2 = inlined_call_operand.vmem [shape: f32[128,1], index: 2, kind: input, shape index: {}]
  %s3 = inlined_call_operand.vmem [shape: f32[128,1], index: 3, kind: input, shape index: {}]
  %s4 = inlined_call_operand.vmem [shape: bf16[128,128], index: 4, kind: input, shape index: {}]
  %s5 = inlined_call_operand.vmem [shape: f32[1,128], index: 5, kind: input, shape index: {}]
  %s6 = inlined_call_operand.hbm [shape: f32[128,128], index: 6, kind: output, shape index: {}]
  %s7 = sld [smem:[#allocation0]]
  $region42: #{tpu_custom_call.1} parent=0
    _
  %s9 = ssub.s32 1, %s7
  %s10 = scalar_select 0, %s9, %s7
  $region1: #{tpu_custom_call.1} parent=0
    #allocation3 [shape = 'u8[65536]{0}', space=vmem, size = 0x10000, scoped, tag = 'output window, operand 0, single buffered']
    #allocation4 [shape = 's32[1]{0}', space=sflag, size = 0x4, scoped, tag = 'scoped memory for tpu_custom_call.1']
    %11 = vsyncpa [#allocation4], 0
    // Predicated region
    $region2: #{tpu_custom_call.1} parent=1 // pred_check
      _
    $region3: #{tpu_custom_call.1} parent=1 // pred_check_branch
      %13 = sbr.rel (0) target = $region5
    $region4: #{tpu_custom_call.1} parent=1 // pred_region
      _
    $region5: #{tpu_custom_call.1} parent=1 // pred_fallthru
      _
    // Predicated region
    $region6: #{tpu_custom_call.1} parent=1 // pred_check
      _
    $region7: #{tpu_custom_call.1} parent=1 // pred_check_branch
      %15 = sbr.rel (0) target = $region9
    $region8: #{tpu_custom_call.1} parent=1 // pred_region
      _
    $region9: #{tpu_custom_call.1} parent=1 // pred_fallthru
      _
    // Predicated region
    $region10: #{tpu_custom_call.1} parent=1 // pred_check
      _
    $region11: #{tpu_custom_call.1} parent=1 // pred_check_branch
      %17 = sbr.rel (0) target = $region13
    $region12: #{tpu_custom_call.1} parent=1 // pred_region
      _
    $region13: #{tpu_custom_call.1} parent=1 // pred_fallthru
      _
    // Predicated region
    $region14: #{tpu_custom_call.1} parent=1 // pred_check
      _
    $region15: #{tpu_custom_call.1} parent=1 // pred_check_branch
      %19 = sbr.rel (0) target = $region17
    $region16: #{tpu_custom_call.1} parent=1 // pred_region
      _
    $region17: #{tpu_custom_call.1} parent=1 // pred_fallthru
      _
    // Predicated region
    $region18: #{tpu_custom_call.1} parent=1 // pred_check
      _
    $region19: #{tpu_custom_call.1} parent=1 // pred_check_branch
      %21 = sbr.rel (0) target = $region21
    $region20: #{tpu_custom_call.1} parent=1 // pred_region
      _
    $region21: #{tpu_custom_call.1} parent=1 // pred_fallthru
      _
    // Predicated region
    $region22: #{tpu_custom_call.1} parent=1 // pred_check
      _
    $region23: #{tpu_custom_call.1} parent=1 // pred_check_branch
      %23 = sbr.rel (0) target = $region25
    $region24: #{tpu_custom_call.1} parent=1 // pred_region
      _
    $region25: #{tpu_custom_call.1} parent=1 // pred_fallthru
      _
    %p24 = scmp.eq.s32.totalorder 0, 0
    // Predicated region
    $region26: #{tpu_custom_call.1} parent=1 // pred_check
      %p25 = pneg %p24
    $region27: #{tpu_custom_call.1} parent=1 // pred_check_branch
      %27 = sbr.rel (%p25) target = $region29
    $region28: #{tpu_custom_call.1} parent=1 // pred_region
      %28 = vst [vmem:[#allocation2] sm:$0xff] 0.0
      %29 = vst [vmem:[#allocation2 + $0x8] sm:$0xff] 0.0
      %30 = vst [vmem:[#allocation2 + $0x10] sm:$0xff] 0.0
      %31 = vst [vmem:[#allocation2 + $0x18] sm:$0xff] 0.0
      %32 = vst [vmem:[#allocation2 + $0x20] sm:$0xff] 0.0
      %33 = vst [vmem:[#allocation2 + $0x28] sm:$0xff] 0.0
      %34 = vst [vmem:[#allocation2 + $0x30] sm:$0xff] 0.0
      %35 = vst [vmem:[#allocation2 + $0x38] sm:$0xff] 0.0
      %36 = vst [vmem:[#allocation2 + $0x40] sm:$0xff] 0.0
      %37 = vst [vmem:[#allocation2 + $0x48] sm:$0xff] 0.0
      %38 = vst [vmem:[#allocation2 + $0x50] sm:$0xff] 0.0
      %39 = vst [vmem:[#allocation2 + $0x58] sm:$0xff] 0.0
      %40 = vst [vmem:[#allocation2 + $0x60] sm:$0xff] 0.0
      %41 = vst [vmem:[#allocation2 + $0x68] sm:$0xff] 0.0
      %42 = vst [vmem:[#allocation2 + $0x70] sm:$0xff] 0.0
      %43 = vst [vmem:[#allocation2 + $0x78] sm:$0xff] 0.0
    $region29: #{tpu_custom_call.1} parent=1 // pred_fallthru
      _
    %v44 = vld [vmem:[%s0] sm:$0xff]
    %v45 = vld [vmem:[%s0 + $0x8] sm:$0xff]
    %v46 = vld [vmem:[%s0 + $0x10] sm:$0xff]
    %v47 = vld [vmem:[%s0 + $0x18] sm:$0xff]
    %v48 = vunpack.c.0.s8 %v44
    %v49 = vunpack.c.1.s8 %v44
    %v50 = vunpack.c.2.s8 %v44
    %v51 = vunpack.c.3.s8 %v44
    %v52 = vunpack.c.0.s8 %v45
    %v53 = vunpack.c.1.s8 %v45
    %v54 = vunpack.c.2.s8 %v45
    %v55 = vunpack.c.3.s8 %v45
    %v56 = vunpack.c.0.s8 %v46
    %v57 = vunpack.c.1.s8 %v46
    %v58 = vunpack.c.2.s8 %v46
    %v59 = vunpack.c.3.s8 %v46
    %v60 = vunpack.c.0.s8 %v47
    %v61 = vunpack.c.1.s8 %v47
    %v62 = vunpack.c.2.s8 %v47
    %v63 = vunpack.c.3.s8 %v47
    %v64 = vcvt.s32.f32 %v48
    %v65 = vcvt.s32.f32 %v49
    %v66 = vcvt.s32.f32 %v50
    %v67 = vcvt.s32.f32 %v51
    %v68 = vcvt.s32.f32 %v52
    %v69 = vcvt.s32.f32 %v53
    %v70 = vcvt.s32.f32 %v54
    %v71 = vcvt.s32.f32 %v55
    %v72 = vcvt.s32.f32 %v56
    %v73 = vcvt.s32.f32 %v57
    %v74 = vcvt.s32.f32 %v58
    %v75 = vcvt.s32.f32 %v59
    %v76 = vcvt.s32.f32 %v60
    %v77 = vcvt.s32.f32 %v61
    %v78 = vcvt.s32.f32 %v62
    %v79 = vcvt.s32.f32 %v63
    %v80 = vpack.c.bf16 %v65, %v64
    %v81 = vpack.c.bf16 %v67, %v66
    %v82 = vpack.c.bf16 %v69, %v68
    %v83 = vpack.c.bf16 %v71, %v70
    %v84 = vpack.c.bf16 %v73, %v72
    %v85 = vpack.c.bf16 %v75, %v74
    %v86 = vpack.c.bf16 %v77, %v76
    %v87 = vpack.c.bf16 %v79, %v78
    %v88 = vld [vmem:[%s1] sm:$0xff]
    %v89 = vld [vmem:[%s1 + $0x8] sm:$0xff]
    %v90 = vld [vmem:[%s1 + $0x10] sm:$0xff]
    %v91 = vld [vmem:[%s1 + $0x18] sm:$0xff]
    %v92 = vld [vmem:[%s1 + $0x20] sm:$0xff]
    %v93 = vld [vmem:[%s1 + $0x28] sm:$0xff]
    %v94 = vld [vmem:[%s1 + $0x30] sm:$0xff]
    %v95 = vld [vmem:[%s1 + $0x38] sm:$0xff]
    %v96 = vld [vmem:[%s1 + $0x40] sm:$0xff]
    %v97 = vld [vmem:[%s1 + $0x48] sm:$0xff]
    %v98 = vld [vmem:[%s1 + $0x50] sm:$0xff]
    %v99 = vld [vmem:[%s1 + $0x58] sm:$0xff]
    %v100 = vld [vmem:[%s1 + $0x60] sm:$0xff]
    %v101 = vld [vmem:[%s1 + $0x68] sm:$0xff]
    %v102 = vld [vmem:[%s1 + $0x70] sm:$0xff]
    %v103 = vld [vmem:[%s1 + $0x78] sm:$0xff]
    %v104 = vld [vmem:[%s2] sm:$0xff]
    %v105 = vld [vmem:[%s2 + $0x8] sm:$0xff]
    %v106 = vld [vmem:[%s2 + $0x10] sm:$0xff]
    %v107 = vld [vmem:[%s2 + $0x18] sm:$0xff]
    %v108 = vld [vmem:[%s2 + $0x20] sm:$0xff]
    %v109 = vld [vmem:[%s2 + $0x28] sm:$0xff]
    %v110 = vld [vmem:[%s2 + $0x30] sm:$0xff]
    %v111 = vld [vmem:[%s2 + $0x38] sm:$0xff]
    %v112 = vld [vmem:[%s2 + $0x40] sm:$0xff]
    %v113 = vld [vmem:[%s2 + $0x48] sm:$0xff]
    %v114 = vld [vmem:[%s2 + $0x50] sm:$0xff]
    %v115 = vld [vmem:[%s2 + $0x58] sm:$0xff]
    %v116 = vld [vmem:[%s2 + $0x60] sm:$0xff]
    %v117 = vld [vmem:[%s2 + $0x68] sm:$0xff]
    %v118 = vld [vmem:[%s2 + $0x70] sm:$0xff]
    %v119 = vld [vmem:[%s2 + $0x78] sm:$0xff]
    %121 = vset.pattern.permute.xlu0 0
    %122 = vperm.xlu0 %121, %v104
    %v123 = vpop.permute.xlu0 %122
    %126 = vset.pattern.permute.xlu0 0
    %127 = vperm.xlu0 %126, %v105
    %v128 = vpop.permute.xlu0 %127
    %131 = vset.pattern.permute.xlu0 0
    %132 = vperm.xlu0 %131, %v106
    %v133 = vpop.permute.xlu0 %132
    %136 = vset.pattern.permute.xlu0 0
    %137 = vperm.xlu0 %136, %v107
    %v138 = vpop.permute.xlu0 %137
    %141 = vset.pattern.permute.xlu0 0
    %142 = vperm.xlu0 %141, %v108
    %v143 = vpop.permute.xlu0 %142
    %146 = vset.pattern.permute.xlu0 0
    %147 = vperm.xlu0 %146, %v109
    %v148 = vpop.permute.xlu0 %147
    %151 = vset.pattern.permute.xlu0 0
    %152 = vperm.xlu0 %151, %v110
    %v153 = vpop.permute.xlu0 %152
    %156 = vset.pattern.permute.xlu0 0
    %157 = vperm.xlu0 %156, %v111
    %v158 = vpop.permute.xlu0 %157
    %161 = vset.pattern.permute.xlu0 0
    %162 = vperm.xlu0 %161, %v112
    %v163 = vpop.permute.xlu0 %162
    %166 = vset.pattern.permute.xlu0 0
    %167 = vperm.xlu0 %166, %v113
    %v168 = vpop.permute.xlu0 %167
    %171 = vset.pattern.permute.xlu0 0
    %172 = vperm.xlu0 %171, %v114
    %v173 = vpop.permute.xlu0 %172
    %176 = vset.pattern.permute.xlu0 0
    %177 = vperm.xlu0 %176, %v115
    %v178 = vpop.permute.xlu0 %177
    %181 = vset.pattern.permute.xlu0 0
    %182 = vperm.xlu0 %181, %v116
    %v183 = vpop.permute.xlu0 %182
    %186 = vset.pattern.permute.xlu0 0
    %187 = vperm.xlu0 %186, %v117
    %v188 = vpop.permute.xlu0 %187
    %191 = vset.pattern.permute.xlu0 0
    %192 = vperm.xlu0 %191, %v118
    %v193 = vpop.permute.xlu0 %192
    %196 = vset.pattern.permute.xlu0 0
    %197 = vperm.xlu0 %196, %v119
    %v198 = vpop.permute.xlu0 %197
    %v200 = vmul.f32 %v88, %v123
    %v201 = vmul.f32 %v89, %v128
    %v202 = vmul.f32 %v90, %v133
    %v203 = vmul.f32 %v91, %v138
    %v204 = vmul.f32 %v92, %v143
    %v205 = vmul.f32 %v93, %v148
    %v206 = vmul.f32 %v94, %v153
    %v207 = vmul.f32 %v95, %v158
    %v208 = vmul.f32 %v96, %v163
    %v209 = vmul.f32 %v97, %v168
    %v210 = vmul.f32 %v98, %v173
    %v211 = vmul.f32 %v99, %v178
    %v212 = vmul.f32 %v100, %v183
    %v213 = vmul.f32 %v101, %v188
    %v214 = vmul.f32 %v102, %v193
    %v215 = vmul.f32 %v103, %v198
    %v216 = vpack.c.bf16 %v201, %v200
    %v217 = vpack.c.bf16 %v203, %v202
    %v218 = vpack.c.bf16 %v205, %v204
    %v219 = vpack.c.bf16 %v207, %v206
    %v220 = vpack.c.bf16 %v209, %v208
    %v221 = vpack.c.bf16 %v211, %v210
    %v222 = vpack.c.bf16 %v213, %v212
    %v223 = vpack.c.bf16 %v215, %v214
    %v224 = vld [vmem:[#allocation2] sm:$0xff]
    %v225 = vld [vmem:[#allocation2 + $0x8] sm:$0xff]
    %v226 = vld [vmem:[#allocation2 + $0x10] sm:$0xff]
    %v227 = vld [vmem:[#allocation2 + $0x18] sm:$0xff]
    %v228 = vld [vmem:[#allocation2 + $0x20] sm:$0xff]
    %v229 = vld [vmem:[#allocation2 + $0x28] sm:$0xff]
    %v230 = vld [vmem:[#allocation2 + $0x30] sm:$0xff]
    %v231 = vld [vmem:[#allocation2 + $0x38] sm:$0xff]
    %v232 = vld [vmem:[#allocation2 + $0x40] sm:$0xff]
    %v233 = vld [vmem:[#allocation2 + $0x48] sm:$0xff]
    %v234 = vld [vmem:[#allocation2 + $0x50] sm:$0xff]
    %v235 = vld [vmem:[#allocation2 + $0x58] sm:$0xff]
    %v236 = vld [vmem:[#allocation2 + $0x60] sm:$0xff]
    %v237 = vld [vmem:[#allocation2 + $0x68] sm:$0xff]
    %v238 = vld [vmem:[#allocation2 + $0x70] sm:$0xff]
    %v239 = vld [vmem:[#allocation2 + $0x78] sm:$0xff]
    %240 = vmatpush.bf16.msra.mxu0 %v223
    %241 = vmatpush.bf16.msra.mxu0 %v222
    %242 = vmatpush.bf16.msra.mxu0 %v221
    %243 = vmatpush.bf16.msra.mxu0 %v220
    %244 = vmatpush.bf16.msra.mxu0 %v219
    %245 = vmatpush.bf16.msra.mxu0 %v218
    %246 = vmatpush.bf16.msra.mxu0 %v217
    %247 = vmatpush.bf16.msra.mxu0 %v216
    %248 = vmatmul.bf16.gmra.mxu0 %v80
    %v249 = vpop.f32.mrf.mxu0
    %v250 = vadd.f32 0.0, %v249
    %v251 = vpop.f32.mrf.mxu0
    %v252 = vadd.f32 0.0, %v251
    %253 = vmatmul.bf16.gmra.mxu0 %v81
    %v254 = vpop.f32.mrf.mxu0
    %v255 = vadd.f32 0.0, %v254
    %v256 = vpop.f32.mrf.mxu0
    %v257 = vadd.f32 0.0, %v256
    %258 = vmatmul.bf16.gmra.mxu0 %v82
    %v259 = vpop.f32.mrf.mxu0
    %v260 = vadd.f32 0.0, %v259
    %v261 = vpop.f32.mrf.mxu0
    %v262 = vadd.f32 0.0, %v261
    %263 = vmatmul.bf16.gmra.mxu0 %v83
    %v264 = vpop.f32.mrf.mxu0
    %v265 = vadd.f32 0.0, %v264
    %v266 = vpop.f32.mrf.mxu0
    %v267 = vadd.f32 0.0, %v266
    %268 = vmatmul.bf16.gmra.mxu0 %v84
    %v269 = vpop.f32.mrf.mxu0
    %v270 = vadd.f32 0.0, %v269
    %v271 = vpop.f32.mrf.mxu0
    %v272 = vadd.f32 0.0, %v271
    %273 = vmatmul.bf16.gmra.mxu0 %v85
    %v274 = vpop.f32.mrf.mxu0
    %v275 = vadd.f32 0.0, %v274
    %v276 = vpop.f32.mrf.mxu0
    %v277 = vadd.f32 0.0, %v276
    %278 = vmatmul.bf16.gmra.mxu0 %v86
    %v279 = vpop.f32.mrf.mxu0
    %v280 = vadd.f32 0.0, %v279
    %v281 = vpop.f32.mrf.mxu0
    %v282 = vadd.f32 0.0, %v281
    %283 = vmatmul.bf16.gmra.mxu0 %v87
    %v284 = vpop.f32.mrf.mxu0
    %v285 = vadd.f32 0.0, %v284
    %v286 = vpop.f32.mrf.mxu0
    %v287 = vadd.f32 0.0, %v286
    %288 = vdwg.mxu0
    %v289 = vadd.f32 %v224, %v250
    %v290 = vadd.f32 %v225, %v252
    %v291 = vadd.f32 %v226, %v255
    %v292 = vadd.f32 %v227, %v257
    %v293 = vadd.f32 %v228, %v260
    %v294 = vadd.f32 %v229, %v262
    %v295 = vadd.f32 %v230, %v265
    %v296 = vadd.f32 %v231, %v267
    %v297 = vadd.f32 %v232, %v270
    %v298 = vadd.f32 %v233, %v272
    %v299 = vadd.f32 %v234, %v275
    %v300 = vadd.f32 %v235, %v277
    %v301 = vadd.f32 %v236, %v280
    %v302 = vadd.f32 %v237, %v282
    %v303 = vadd.f32 %v238, %v285
    %v304 = vadd.f32 %v239, %v287
    %305 = vst [vmem:[#allocation2] sm:$0xff] %v289
    %306 = vst [vmem:[#allocation2 + $0x8] sm:$0xff] %v290
    %307 = vst [vmem:[#allocation2 + $0x10] sm:$0xff] %v291
    %308 = vst [vmem:[#allocation2 + $0x18] sm:$0xff] %v292
    %309 = vst [vmem:[#allocation2 + $0x20] sm:$0xff] %v293
    %310 = vst [vmem:[#allocation2 + $0x28] sm:$0xff] %v294
    %311 = vst [vmem:[#allocation2 + $0x30] sm:$0xff] %v295
    %312 = vst [vmem:[#allocation2 + $0x38] sm:$0xff] %v296
    %313 = vst [vmem:[#allocation2 + $0x40] sm:$0xff] %v297
    %314 = vst [vmem:[#allocation2 + $0x48] sm:$0xff] %v298
    %315 = vst [vmem:[#allocation2 + $0x50] sm:$0xff] %v299
    %316 = vst [vmem:[#allocation2 + $0x58] sm:$0xff] %v300
    %317 = vst [vmem:[#allocation2 + $0x60] sm:$0xff] %v301
    %318 = vst [vmem:[#allocation2 + $0x68] sm:$0xff] %v302
    %319 = vst [vmem:[#allocation2 + $0x70] sm:$0xff] %v303
    %320 = vst [vmem:[#allocation2 + $0x78] sm:$0xff] %v304
    // Predicated region
    $region30: #{tpu_custom_call.1} parent=1 // pred_check
      %p321 = pneg %p24
    $region31: #{tpu_custom_call.1} parent=1 // pred_check_branch
      %323 = sbr.rel (%p321) target = $region33
    $region32: #{tpu_custom_call.1} parent=1 // pred_region
      %v324 = vld [vmem:[#allocation2] sm:$0xff]
      %v325 = vld [vmem:[#allocation2 + $0x8] sm:$0xff]
      %v326 = vld [vmem:[#allocation2 + $0x10] sm:$0xff]
      %v327 = vld [vmem:[#allocation2 + $0x18] sm:$0xff]
      %v328 = vld [vmem:[#allocation2 + $0x20] sm:$0xff]
      %v329 = vld [vmem:[#allocation2 + $0x28] sm:$0xff]
      %v330 = vld [vmem:[#allocation2 + $0x30] sm:$0xff]
      %v331 = vld [vmem:[#allocation2 + $0x38] sm:$0xff]
      %v332 = vld [vmem:[#allocation2 + $0x40] sm:$0xff]
      %v333 = vld [vmem:[#allocation2 + $0x48] sm:$0xff]
      %v334 = vld [vmem:[#allocation2 + $0x50] sm:$0xff]
      %v335 = vld [vmem:[#allocation2 + $0x58] sm:$0xff]
      %v336 = vld [vmem:[#allocation2 + $0x60] sm:$0xff]
      %v337 = vld [vmem:[#allocation2 + $0x68] sm:$0xff]
      %v338 = vld [vmem:[#allocation2 + $0x70] sm:$0xff]
      %v339 = vld [vmem:[#allocation2 + $0x78] sm:$0xff]
      %v340 = vld [vmem:[%s3] sm:$0xff]
      %v341 = vld [vmem:[%s3 + $0x8] sm:$0xff]
      %v342 = vld [vmem:[%s3 + $0x10] sm:$0xff]
      %v343 = vld [vmem:[%s3 + $0x18] sm:$0xff]
      %v344 = vld [vmem:[%s3 + $0x20] sm:$0xff]
      %v345 = vld [vmem:[%s3 + $0x28] sm:$0xff]
      %v346 = vld [vmem:[%s3 + $0x30] sm:$0xff]
      %v347 = vld [vmem:[%s3 + $0x38] sm:$0xff]
      %v348 = vld [vmem:[%s3 + $0x40] sm:$0xff]
      %v349 = vld [vmem:[%s3 + $0x48] sm:$0xff]
      %v350 = vld [vmem:[%s3 + $0x50] sm:$0xff]
      %v351 = vld [vmem:[%s3 + $0x58] sm:$0xff]
      %v352 = vld [vmem:[%s3 + $0x60] sm:$0xff]
      %v353 = vld [vmem:[%s3 + $0x68] sm:$0xff]
      %v354 = vld [vmem:[%s3 + $0x70] sm:$0xff]
      %v355 = vld [vmem:[%s3 + $0x78] sm:$0xff]
      %357 = vset.pattern.permute.xlu0 0
      %358 = vperm.xlu0 %357, %v340
      %v359 = vpop.permute.xlu0 %358
      %362 = vset.pattern.permute.xlu0 0
      %363 = vperm.xlu0 %362, %v341
      %v364 = vpop.permute.xlu0 %363
      %367 = vset.pattern.permute.xlu0 0
      %368 = vperm.xlu0 %367, %v342
      %v369 = vpop.permute.xlu0 %368
      %372 = vset.pattern.permute.xlu0 0
      %373 = vperm.xlu0 %372, %v343
      %v374 = vpop.permute.xlu0 %373
      %377 = vset.pattern.permute.xlu0 0
      %378 = vperm.xlu0 %377, %v344
      %v379 = vpop.permute.xlu0 %378
      %382 = vset.pattern.permute.xlu0 0
      %383 = vperm.xlu0 %382, %v345
      %v384 = vpop.permute.xlu0 %383
      %387 = vset.pattern.permute.xlu0 0
      %388 = vperm.xlu0 %387, %v346
      %v389 = vpop.permute.xlu0 %388
      %392 = vset.pattern.permute.xlu0 0
      %393 = vperm.xlu0 %392, %v347
      %v394 = vpop.permute.xlu0 %393
      %397 = vset.pattern.permute.xlu0 0
      %398 = vperm.xlu0 %397, %v348
      %v399 = vpop.permute.xlu0 %398
      %402 = vset.pattern.permute.xlu0 0
      %403 = vperm.xlu0 %402, %v349
      %v404 = vpop.permute.xlu0 %403
      %407 = vset.pattern.permute.xlu0 0
      %408 = vperm.xlu0 %407, %v350
      %v409 = vpop.permute.xlu0 %408
      %412 = vset.pattern.permute.xlu0 0
      %413 = vperm.xlu0 %412, %v351
      %v414 = vpop.permute.xlu0 %413
      %417 = vset.pattern.permute.xlu0 0
      %418 = vperm.xlu0 %417, %v352
      %v419 = vpop.permute.xlu0 %418
      %422 = vset.pattern.permute.xlu0 0
      %423 = vperm.xlu0 %422, %v353
      %v424 = vpop.permute.xlu0 %423
      %427 = vset.pattern.permute.xlu0 0
      %428 = vperm.xlu0 %427, %v354
      %v429 = vpop.permute.xlu0 %428
      %432 = vset.pattern.permute.xlu0 0
      %433 = vperm.xlu0 %432, %v355
      %v434 = vpop.permute.xlu0 %433
      %v436 = vmul.f32 %v324, %v359
      %v437 = vmul.f32 %v325, %v364
      %v438 = vmul.f32 %v326, %v369
      %v439 = vmul.f32 %v327, %v374
      %v440 = vmul.f32 %v328, %v379
      %v441 = vmul.f32 %v329, %v384
      %v442 = vmul.f32 %v330, %v389
      %v443 = vmul.f32 %v331, %v394
      %v444 = vmul.f32 %v332, %v399
      %v445 = vmul.f32 %v333, %v404
      %v446 = vmul.f32 %v334, %v409
      %v447 = vmul.f32 %v335, %v414
      %v448 = vmul.f32 %v336, %v419
      %v449 = vmul.f32 %v337, %v424
      %v450 = vmul.f32 %v338, %v429
      %v451 = vmul.f32 %v339, %v434
      %v452 = vpack.c.bf16 %v437, %v436
      %v453 = vpack.c.bf16 %v439, %v438
      %v454 = vpack.c.bf16 %v441, %v440
      %v455 = vpack.c.bf16 %v443, %v442
      %v456 = vpack.c.bf16 %v445, %v444
      %v457 = vpack.c.bf16 %v447, %v446
      %v458 = vpack.c.bf16 %v449, %v448
      %v459 = vpack.c.bf16 %v451, %v450
      %v460 = vld [vmem:[%s4] sm:$0xf]
      %v461 = vld [vmem:[%s4 + $0x4] sm:$0xf]
      %v462 = vld [vmem:[%s4 + $0x8] sm:$0xf]
      %v463 = vld [vmem:[%s4 + $0xc] sm:$0xf]
      %v464 = vld [vmem:[%s4 + $0x10] sm:$0xf]
      %v465 = vld [vmem:[%s4 + $0x14] sm:$0xf]
      %v466 = vld [vmem:[%s4 + $0x18] sm:$0xf]
      %v467 = vld [vmem:[%s4 + $0x1c] sm:$0xf]
      %v468 = vld [vmem:[%s4 + $0x20] sm:$0xf]
      %v469 = vld [vmem:[%s4 + $0x24] sm:$0xf]
      %v470 = vld [vmem:[%s4 + $0x28] sm:$0xf]
      %v471 = vld [vmem:[%s4 + $0x2c] sm:$0xf]
      %v472 = vld [vmem:[%s4 + $0x30] sm:$0xf]
      %v473 = vld [vmem:[%s4 + $0x34] sm:$0xf]
      %v474 = vld [vmem:[%s4 + $0x38] sm:$0xf]
      %v475 = vld [vmem:[%s4 + $0x3c] sm:$0xf]
      %v476 = vld [vmem:[%s5] sm:$0x1]
      %v478 = vperm.slane %v476, 0
      %v496 = vunpack.c.l.b16 %v460
      %v497 = vunpack.c.l.b16 %v461
      %v498 = vunpack.c.l.b16 %v462
      %v499 = vunpack.c.l.b16 %v463
      %v500 = vunpack.c.l.b16 %v464
      %v501 = vunpack.c.l.b16 %v465
      %v502 = vunpack.c.l.b16 %v466
      %v503 = vunpack.c.l.b16 %v467
      %v504 = vunpack.c.l.b16 %v468
      %v505 = vunpack.c.l.b16 %v469
      %v506 = vunpack.c.l.b16 %v470
      %v507 = vunpack.c.l.b16 %v471
      %v508 = vunpack.c.l.b16 %v472
      %v509 = vunpack.c.l.b16 %v473
      %v510 = vunpack.c.l.b16 %v474
      %v511 = vunpack.c.l.b16 %v475
      %v512 = vpack.c.b16 %v497, %v496
      %v513 = vpack.c.b16 %v499, %v498
      %v514 = vpack.c.b16 %v501, %v500
      %v515 = vpack.c.b16 %v503, %v502
      %v516 = vpack.c.b16 %v505, %v504
      %v517 = vpack.c.b16 %v507, %v506
      %v518 = vpack.c.b16 %v509, %v508
      %v519 = vpack.c.b16 %v511, %v510
      %528 = vmatpush.bf16.msra.mxu0 %v519
      %529 = vmatpush.bf16.msra.mxu0 %v518
      %530 = vmatpush.bf16.msra.mxu0 %v517
      %531 = vmatpush.bf16.msra.mxu0 %v516
      %532 = vmatpush.bf16.msra.mxu0 %v515
      %533 = vmatpush.bf16.msra.mxu0 %v514
      %534 = vmatpush.bf16.msra.mxu0 %v513
      %535 = vmatpush.bf16.msra.mxu0 %v512
      %536 = vmatmul.bf16.gmra.mxu0 %v452
      %v537 = vpop.f32.mrf.mxu0
      %v538 = vadd.f32 %v478, %v537
      %v539 = vpop.f32.mrf.mxu0
      %v540 = vadd.f32 %v478, %v539
      %541 = vmatmul.bf16.gmra.mxu0 %v453
      %v542 = vpop.f32.mrf.mxu0
      %v543 = vadd.f32 %v478, %v542
      %v544 = vpop.f32.mrf.mxu0
      %v545 = vadd.f32 %v478, %v544
      %546 = vmatmul.bf16.gmra.mxu0 %v454
      %v547 = vpop.f32.mrf.mxu0
      %v548 = vadd.f32 %v478, %v547
      %v549 = vpop.f32.mrf.mxu0
      %v550 = vadd.f32 %v478, %v549
      %551 = vmatmul.bf16.gmra.mxu0 %v455
      %v552 = vpop.f32.mrf.mxu0
      %v553 = vadd.f32 %v478, %v552
      %v554 = vpop.f32.mrf.mxu0
      %v555 = vadd.f32 %v478, %v554
      %556 = vmatmul.bf16.gmra.mxu0 %v456
      %v557 = vpop.f32.mrf.mxu0
      %v558 = vadd.f32 %v478, %v557
      %v559 = vpop.f32.mrf.mxu0
      %v560 = vadd.f32 %v478, %v559
      %561 = vmatmul.bf16.gmra.mxu0 %v457
      %v562 = vpop.f32.mrf.mxu0
      %v563 = vadd.f32 %v478, %v562
      %v564 = vpop.f32.mrf.mxu0
      %v565 = vadd.f32 %v478, %v564
      %566 = vmatmul.bf16.gmra.mxu0 %v458
      %v567 = vpop.f32.mrf.mxu0
      %v568 = vadd.f32 %v478, %v567
      %v569 = vpop.f32.mrf.mxu0
      %v570 = vadd.f32 %v478, %v569
      %571 = vmatmul.bf16.gmra.mxu0 %v459
      %v572 = vpop.f32.mrf.mxu0
      %v573 = vadd.f32 %v478, %v572
      %v574 = vpop.f32.mrf.mxu0
      %v575 = vadd.f32 %v478, %v574
      %576 = vdwg.mxu0
      %577 = vst [vmem:[#allocation3] sm:$0xff] %v538
      %578 = vst [vmem:[#allocation3 + $0x8] sm:$0xff] %v540
      %579 = vst [vmem:[#allocation3 + $0x10] sm:$0xff] %v543
      %580 = vst [vmem:[#allocation3 + $0x18] sm:$0xff] %v545
      %581 = vst [vmem:[#allocation3 + $0x20] sm:$0xff] %v548
      %582 = vst [vmem:[#allocation3 + $0x28] sm:$0xff] %v550
      %583 = vst [vmem:[#allocation3 + $0x30] sm:$0xff] %v553
      %584 = vst [vmem:[#allocation3 + $0x38] sm:$0xff] %v555
      %585 = vst [vmem:[#allocation3 + $0x40] sm:$0xff] %v558
      %586 = vst [vmem:[#allocation3 + $0x48] sm:$0xff] %v560
      %587 = vst [vmem:[#allocation3 + $0x50] sm:$0xff] %v563
      %588 = vst [vmem:[#allocation3 + $0x58] sm:$0xff] %v565
      %589 = vst [vmem:[#allocation3 + $0x60] sm:$0xff] %v568
      %590 = vst [vmem:[#allocation3 + $0x68] sm:$0xff] %v570
      %591 = vst [vmem:[#allocation3 + $0x70] sm:$0xff] %v573
      %592 = vst [vmem:[#allocation3 + $0x78] sm:$0xff] %v575
    $region33: #{tpu_custom_call.1} parent=1 // pred_fallthru
      _
    // Predicated region
    $region34: #{tpu_custom_call.1} parent=1 // pred_check
      _
    $region35: #{tpu_custom_call.1} parent=1 // pred_check_branch
      %594 = sbr.rel (0) target = $region37
    $region36: #{tpu_custom_call.1} parent=1 // pred_region
      %596 = vsyncadd [#allocation4], 0
      %s597 = sshll.u32 [#allocation3], 4
      %s598 = int_to_ptr.vmem [resolvable:$true] %s597
      %s599 = sshll.u32 %s6, 4
      %s600 = int_to_ptr.hbm [resolvable:$true] %s599
      %605 = dma.vmem_to_hbm [thread:$0]  %s598, 2048, %s600, [#allocation4], 128, 128, 8
    $region37: #{tpu_custom_call.1} parent=1 // pred_fallthru
      _
    // Predicated region
    $region38: #{tpu_custom_call.1} parent=1 // pred_check
      _
    $region39: #{tpu_custom_call.1} parent=1 // pred_check_branch
      %607 = sbr.rel (0) target = $region41
    $region40: #{tpu_custom_call.1} parent=1 // pred_region
      %609 = dma.done [#allocation4], 2048
    $region41: #{tpu_custom_call.1} parent=1 // pred_fallthru
      _
    %610 = vsyncpa [#allocation4], 1

</llo_original>
